<compile_context>
chip_gen: v7x
topology: tpu7x:2x2x1
jax: 0.10.0
libtpu: 0.0.40
codegen_flags: <defaults>
</compile_context>

<pallas_src>
import functools

import jax
import jax.numpy as jnp
from jax import lax
from jax.experimental import pallas as pl
from jax.experimental.pallas import tpu as pltpu


def _cdiv(a, b):
    return (a + b - 1) // b


def _round_up(x, m):
    return (x + m - 1) // m * m


def _vmem_capacity_bytes():
    try:
        return int(pltpu.get_tpu_info().vmem_capacity_bytes)
    except Exception:
        return 64 << 20  # conservative (v7x per-TensorCore VMEM)


def _pick_tm(M, rows_budget):
    """M tile: multiple of 8 (f32 sublanes); >= 2 grid steps when possible."""
    if M <= 8:
        return M  # single block equal to the full dim (always legal)
    tm = max(8, min(int(rows_budget), _round_up(_cdiv(M, 2), 8), 1024))
    if tm >= 256:
        tm = tm // 256 * 256
    elif tm >= 128:
        tm = tm // 128 * 128
    else:
        tm = tm // 8 * 8
    return max(8, tm)


# ---------------------------------------------------------------------------
# Kernels
# ---------------------------------------------------------------------------
def _td_linear_kernel(x_ref, w_ref, b_ref, o_ref):
    """One M tile, full K resident: o = bf16(x) @ w_bf16 + b (f32 MXU acc)."""
    x = x_ref[...].astype(jnp.bfloat16)  # cast on the VPU, hidden under DMA
    acc = jnp.dot(x, w_ref[...], preferred_element_type=jnp.float32)
    o_ref[...] = (acc + b_ref[...]).astype(o_ref.dtype)


def _td_linear_ktiled_kernel(x_ref, w_ref, b_ref, o_ref, acc_ref, *, K, tk):
    """K-tiled fallback: accumulate over the (last, 'arbitrary') grid axis."""
    kk = pl.program_id(1)

    @pl.when(kk == 0)
    def _():
        acc_ref[...] = jnp.zeros_like(acc_ref)

    x = x_ref[...]
    w = w_ref[...]
    if K % tk != 0:
        # Ragged last K block: OOB lanes/rows hold garbage -> zero both sides
        # so they contribute exactly 0 to the accumulator.
        base = kk * tk
        col = base + lax.broadcasted_iota(jnp.int32, (1, tk), 1)
        row = base + lax.broadcasted_iota(jnp.int32, (tk, 1), 0)
        x = jnp.where(col < K, x, 0)
        w = jnp.where(row < K, w, 0)

    acc_ref[...] += jnp.dot(x.astype(jnp.bfloat16), w,
                            preferred_element_type=jnp.float32)

    @pl.when(kk == pl.num_programs(1) - 1)
    def _():
        o_ref[...] = (acc_ref[...] + b_ref[...]).astype(o_ref.dtype)


# ---------------------------------------------------------------------------
# Wrapper = TimeDistributed(Flatten + Linear, batch_first=True)
# ---------------------------------------------------------------------------
def time_distributed_linear(input_seq, tags, weight, bias, *, force_k_tile=None):
    """input_seq: (B, T, C, H, W); weight: (C*H*W, D_OUT); bias: (D_OUT,).

    Returns (output, tags) with output of shape (B, T, D_OUT); `tags` passes
    through unchanged (TimeDistributed semantics).
    """
    assert input_seq.ndim > 2
    B = input_seq.shape[0]
    C, H, W = input_seq.shape[-3:]
    K = C * H * W
    M = 1
    for d in input_seq.shape[:-3]:
        M *= d
    N = weight.shape[1]
    assert weight.shape[0] == K and bias.shape == (N,)
    out_dtype = input_seq.dtype
    x_bytes = jnp.dtype(input_seq.dtype).itemsize
    o_bytes = jnp.dtype(out_dtype).itemsize

    # TimeDistributed "view" glue: contiguous reshape, no data movement.
    x2d = input_seq.reshape(M, K)

    # One-time prep of the small static parameters (wrapper should be jitted).
    w_bf16 = weight.astype(jnp.bfloat16)
    b_f32 = bias.astype(jnp.float32).reshape(1, N)

    vmem_cap = _vmem_capacity_bytes()
    budget = int(0.80 * vmem_cap)  # leave headroom for compiler scratch

    # Single-shot-K plan: (K, N) bf16 weight resident (double-buffered ->
    # accounted 2x), x / out tiles double-buffered.
    resident_w = 2 * K * N * 2
    per_row = 2 * K * x_bytes + 2 * N * o_bytes
    single_shot = (force_k_tile is None) and (resident_w + 128 * per_row <= budget)

    if single_shot:
        tm = _pick_tm(M, (budget - resident_w) // per_row)
        grid = (_cdiv(M, tm),)
        vmem_need = resident_w + tm * per_row + 2 * N * 4 + (1 << 20)
        vmem_limit = int(min(max(vmem_need, 16 << 20), budget))

        out2d = pl.pallas_call(
            _td_linear_kernel,
            out_shape=jax.ShapeDtypeStruct((M, N), out_dtype),
            grid_spec=pltpu.PrefetchScalarGridSpec(
                num_scalar_prefetch=0,
                grid=grid,
                in_specs=[
                    pl.BlockSpec((tm, K), lambda i: (i, 0)),  # x (native dtype)
                    pl.BlockSpec((K, N), lambda i: (0, 0)),   # full weight (bf16)
                    pl.BlockSpec((1, N), lambda i: (0, 0)),   # bias (f32)
                ],
                out_specs=pl.BlockSpec((tm, N), lambda i: (i, 0)),
            ),
            compiler_params=pltpu.CompilerParams(
                dimension_semantics=("parallel",),
                vmem_limit_bytes=vmem_limit,
            ),
        )(x2d, w_bf16, b_f32)
    else:
        # K-tiled fallback (v7x 64 MiB VMEM / very large C*H*W).
        if force_k_tile is not None:
            tk = int(force_k_tile)
        else:
            tk = (budget // 4) // (2 * N * 2)  # ~1/4 budget for the weight tile
            tk = max(128, tk // 128 * 128)
        tk = min(tk, _round_up(K, 128))
        w_tile = 2 * tk * N * 2
        per_row_k = 2 * tk * x_bytes + 2 * N * o_bytes + N * 4  # + acc scratch
        tm = _pick_tm(M, max(8, (budget - w_tile) // per_row_k))
        grid = (_cdiv(M, tm), _cdiv(K, tk))
        vmem_need = w_tile + tm * per_row_k + 2 * N * 4 + (1 << 20)
        vmem_limit = int(min(max(vmem_need, 16 << 20), budget))

        kernel = functools.partial(_td_linear_ktiled_kernel, K=K, tk=tk)
        out2d = pl.pallas_call(
            kernel,
            out_shape=jax.ShapeDtypeStruct((M, N), out_dtype),
            grid_spec=pltpu.PrefetchScalarGridSpec(
                num_scalar_prefetch=0,
                grid=grid,
                in_specs=[
                    pl.BlockSpec((tm, tk), lambda i, k: (i, k)),  # x tile
                    pl.BlockSpec((tk, N), lambda i, k: (k, 0)),   # weight K tile
                    pl.BlockSpec((1, N), lambda i, k: (0, 0)),    # bias
                ],
                out_specs=pl.BlockSpec((tm, N), lambda i, k: (i, 0)),
                scratch_shapes=[pltpu.VMEM((tm, N), jnp.float32)],
            ),
            compiler_params=pltpu.CompilerParams(
                dimension_semantics=("parallel", "arbitrary"),
                vmem_limit_bytes=vmem_limit,
            ),
        )(x2d, w_bf16, b_f32)

    # batch_first=True: view as (B, -1, out_features); tags pass through.
    output = out2d.reshape(B, -1, N)
    return output, tags


if __name__ == "__main__":
    # Small deterministic example: B=2, T=8, C=4, H=W=16, D_OUT=32.
    B, T, C, H, W = 2, 8, 4, 16, 16
    D_OUT = 32
    K = C * H * W

    key = jax.random.PRNGKey(0)
    k_x, k_w, k_b, k_tags = jax.random.split(key, 4)

    input_seq = jax.random.normal(k_x, (B, T, C, H, W), dtype=jnp.float32)
    weight = (jax.random.normal(k_w, (K, D_OUT), dtype=jnp.float32)
              * (1.0 / jnp.sqrt(K)))
    bias = jax.random.normal(k_b, (D_OUT,), dtype=jnp.float32) * 0.01
    tags = jax.random.randint(k_tags, (B, T), 0, 5)

    td = jax.jit(time_distributed_linear, static_argnames=("force_k_tile",))

    # Default path: full-K-resident weight, M-tiled "parallel" grid.
    output, tags_out = td(input_seq, tags, weight, bias)
    output = jax.block_until_ready(output)
    tags_out = jax.block_until_ready(tags_out)

    # Reference (same semantics as the PyTorch forward). Kernel casts the
    # activations/weight to bf16 with f32 MXU accumulation -> loose tolerance.
    ref = (input_seq.reshape(B * T, K) @ weight + bias).reshape(B, -1, D_OUT)
    assert output.shape == (B, T, D_OUT)
    assert jnp.allclose(output, ref, atol=2e-2, rtol=2e-2)
    assert jnp.array_equal(tags_out, tags)

    # Also exercise the K-tiled fallback (used on v7x for large C*H*W), with a
    # tile that does NOT divide K so the in-kernel tail masking path runs.
    out_kt, _ = td(input_seq, tags, weight, bias, force_k_tile=384)
    out_kt = jax.block_until_ready(out_kt)
    assert jnp.allclose(out_kt, ref, atol=2e-2, rtol=2e-2)

    print("KERNEL_OK")
</pallas_src>

<mosaic_0001>
module attributes {stable_mosaic.version = 11 : i64} {
  func.func @_td_linear_kernel(%arg0: i32, %arg1: memref<8x1024xf32, #tpu.memory_space<vmem>>, %arg2: memref<1024x32xbf16, #tpu.memory_space<vmem>>, %arg3: memref<1x32xf32, #tpu.memory_space<vmem>>, %arg4: memref<8x32xf32, #tpu.memory_space<vmem>>) attributes {dimension_semantics = [#tpu.dimension_semantics<parallel>], iteration_bounds = array<i64: 2>, scalar_prefetch = 0 : i64, scratch_operands = 0 : i64, tpu.core_type = #tpu.core_type<tc>, window_params = [{transform_indices = @transform_0, window_bounds = array<i64: 8, 1024>}, {pipeline_mode = #tpu.pipeline_mode<synchronous>, transform_indices = @transform_1, window_bounds = array<i64: 1024, 32>}, {pipeline_mode = #tpu.pipeline_mode<synchronous>, transform_indices = @transform_2, window_bounds = array<i64: 1, 32>}, {transform_indices = @transform_3, window_bounds = array<i64: 8, 32>}]} {
    %c0 = arith.constant 0 : index
    %c0_0 = arith.constant 0 : index
    %0 = vector.load %arg1[%c0, %c0_0] : memref<8x1024xf32, #tpu.memory_space<vmem>>, vector<8x1024xf32>
    %1 = arith.truncf %0 : vector<8x1024xf32> to vector<8x1024xbf16>
    %c0_1 = arith.constant 0 : index
    %c0_2 = arith.constant 0 : index
    %2 = vector.load %arg2[%c0_1, %c0_2] : memref<1024x32xbf16, #tpu.memory_space<vmem>>, vector<1024x32xbf16>
    %cst = arith.constant dense<0.000000e+00> : vector<8x32xf32>
    %3 = tpu.matmul %1, %2, %cst {dimension_numbers = #tpu.dot_dimension_numbers<[1], [0], [0], [1], [0, 0, 1, 1], [], []>} : vector<8x1024xbf16>, vector<1024x32xbf16>, vector<8x32xf32> -> vector<8x32xf32>
    %c0_3 = arith.constant 0 : index
    %c0_4 = arith.constant 0 : index
    %4 = vector.load %arg3[%c0_3, %c0_4] : memref<1x32xf32, #tpu.memory_space<vmem>>, vector<1x32xf32>
    %5 = vector.broadcast %4 : vector<1x32xf32> to vector<8x32xf32>
    %6 = arith.addf %3, %5 : vector<8x32xf32>
    %c0_5 = arith.constant 0 : index
    %c0_6 = arith.constant 0 : index
    %7 = vector.load %arg4[%c0_5, %c0_6] : memref<8x32xf32, #tpu.memory_space<vmem>>, vector<8x32xf32>
    tpu.vector_store %arg4[%c0_5, %c0_6], %6 {strides = array<i32>} : memref<8x32xf32, #tpu.memory_space<vmem>>, vector<8x32xf32>,
    return
  }
  func.func @transform_0(%arg0: i32) -> (i32, i32) {
    %c0_i32 = arith.constant 0 : i32
    %c0_i32_0 = arith.constant 0 : i32
    return %arg0, %c0_i32 : i32, i32
  }
  func.func @transform_1(%arg0: i32) -> (i32, i32) {
    %c0_i32 = arith.constant 0 : i32
    %c0_i32_0 = arith.constant 0 : i32
    %c0_i32_1 = arith.constant 0 : i32
    return %c0_i32, %c0_i32_0 : i32, i32
  }
  func.func @transform_2(%arg0: i32) -> (i32, i32) {
    %c0_i32 = arith.constant 0 : i32
    %c0_i32_0 = arith.constant 0 : i32
    %c0_i32_1 = arith.constant 0 : i32
    return %c0_i32, %c0_i32_0 : i32, i32
  }
  func.func @transform_3(%arg0: i32) -> (i32, i32) {
    %c0_i32 = arith.constant 0 : i32
    %c0_i32_0 = arith.constant 0 : i32
    return %arg0, %c0_i32 : i32, i32
  }
}

</mosaic_0001>

<llo_original>
// kernel: time_distributed_linear.1
$region0: #{time_distributed_linear.1}
  #allocation0 [shape = 'u32[]', space=smem, size = 0x4, offset = 0x4, fixed_abs, tag = 'smem constant byte address 0x4 - core index']
  #allocation1 [shape = 'u32[144,128]{1,0:T(1,128)}', space=vmem, size = 0x12000, scoped, tag = 'internal scratch']
  %s0 = inlined_call_operand.vmem [shape: f32[16,1024], index: 0, kind: input, shape index: {}]
  %s1 = inlined_call_operand.vmem [shape: bf16[1024,32], index: 1, kind: input, shape index: {}]
  %s2 = inlined_call_operand.vmem [shape: f32[1,32], index: 2, kind: input, shape index: {}]
  %s3 = inlined_call_operand.hbm [shape: f32[16,32], index: 3, kind: output, shape index: {}]
  %s4 = sld [smem:[#allocation0]]
  $region45: #{time_distributed_linear.1} parent=0
    _
  %s6 = ssub.s32 1, %s4
  %s7 = scalar_select 0, %s6, %s4
  $region1: #{time_distributed_linear.1} parent=0
    #allocation2 [shape = 'u8[8192]{0}', space=vmem, size = 0x2000, scoped, tag = 'output window, operand 0']
    #allocation3 [shape = 's32[2]{0}', space=sflag, size = 0x8, scoped, tag = 'scoped memory for time_distributed_linear.1']
    %8 = vsyncpa [#allocation3], 0
    %s9 = scalar_lea.sflag [#allocation3], 1
    %10 = vsyncpa %s9, 0
    loop: start=0, step=1, limit=4
    $region2: #{time_distributed_linear.1} parent=1 // loop_pre_header
      _
    $region3: #{time_distributed_linear.1} parent=1 // loop_header
      %s12 = sphi 0, %s16
      %p13 = scmp.ge.s32.totalorder %s12, 4
      %s22 = sphi 0, %s24
      %s25 = sphi 0, %s22
      %s26 = sphi 0, %s25
      %s42 = sphi 0, %s26
      %s46 = sphi 0, %s46
      %s48 = sphi 0, %s46
      %s49 = sphi 0, %s48
      %s63 = sphi 0, %s49
      %s67 = sphi 0, %s67
      %s69 = sphi 0, %s67
      %s70 = sphi 0, %s69
      %s84 = sphi 0, %s70
      %s90 = sphi 0, %s92
      %s93 = sphi 0, %s90
      %s94 = sphi 0, %s93
      %s110 = sphi 0, %s94
    $region4: #{time_distributed_linear.1} parent=1 // loop_header_branch
      %15 = sbr.rel (%p13) target = $region8
    $region5: #{time_distributed_linear.1} parent=1 // loop_body
      %s17 = ssub.s32 %s12, 1
      %s18 = ssub.s32 %s12, 2
      %s19 = sadd.s32 %s12, 1
      %s20 = ssub.s32 %s12, %s19
      %p21 = scmp.eq.s32.totalorder %s20, 0
      %s23 = sadd.s32 %s22, 1
      %s24 = scalar_select %p21, %s22, %s23
      %p27 = pneg %p21
      %p28 = scmp.eq.s32.totalorder %s12, 1
      %p29 = por %p27, %p28
      %p30 = scmp.ne.s32.totalorder %s22, %s25
      %p31 = scmp.eq.s32.totalorder %s12, 0
      %p32 = por %p30, %p31
      %p33 = scmp.ne.s32.totalorder %s22, %s25
      %p34 = scmp.eq.s32.totalorder %s17, 1
      %p35 = por %p33, %p34
      %p36 = scmp.ne.s32.totalorder %s25, %s26
      %p37 = scmp.eq.s32.totalorder %s17, 0
      %p38 = por %p36, %p37
      %p39 = scmp.ne.s32.totalorder %s25, %s26
      %p40 = scmp.eq.s32.totalorder %s18, 1
      %p41 = por %p39, %p40
      %p43 = scmp.ne.s32.totalorder %s26, %s42
      %p44 = scmp.eq.s32.totalorder %s18, 0
      %p45 = por %p43, %p44
      %s47 = sadd.s32 %s46, 1
      %p50 = scmp.eq.s32.totalorder %s12, 1
      %p51 = scmp.ne.s32.totalorder %s46, %s48
      %p52 = scmp.eq.s32.totalorder %s12, 0
      %p53 = por %p51, %p52
      %p54 = scmp.ne.s32.totalorder %s46, %s48
      %p55 = scmp.eq.s32.totalorder %s17, 1
      %p56 = por %p54, %p55
      %p57 = scmp.ne.s32.totalorder %s48, %s49
      %p58 = scmp.eq.s32.totalorder %s17, 0
      %p59 = por %p57, %p58
      %p60 = scmp.ne.s32.totalorder %s48, %s49
      %p61 = scmp.eq.s32.totalorder %s18, 1
      %p62 = por %p60, %p61
      %p64 = scmp.ne.s32.totalorder %s49, %s63
      %p65 = scmp.eq.s32.totalorder %s18, 0
      %p66 = por %p64, %p65
      %s68 = sadd.s32 %s67, 1
      %p71 = scmp.eq.s32.totalorder %s12, 1
      %p72 = scmp.ne.s32.totalorder %s67, %s69
      %p73 = scmp.eq.s32.totalorder %s12, 0
      %p74 = por %p72, %p73
      %p75 = scmp.ne.s32.totalorder %s67, %s69
      %p76 = scmp.eq.s32.totalorder %s17, 1
      %p77 = por %p75, %p76
      %p78 = scmp.ne.s32.totalorder %s69, %s70
      %p79 = scmp.eq.s32.totalorder %s17, 0
      %p80 = por %p78, %p79
      %p81 = scmp.ne.s32.totalorder %s69, %s70
      %p82 = scmp.eq.s32.totalorder %s18, 1
      %p83 = por %p81, %p82
      %p85 = scmp.ne.s32.totalorder %s70, %s84
      %p86 = scmp.eq.s32.totalorder %s18, 0
      %p87 = por %p85, %p86
      %s88 = ssub.s32 %s12, %s19
      %p89 = scmp.eq.s32.totalorder %s88, 0
      %s91 = sadd.s32 %s90, 1
      %s92 = scalar_select %p89, %s90, %s91
      %p95 = pneg %p89
      %p96 = scmp.eq.s32.totalorder %s12, 1
      %p97 = por %p95, %p96
      %p98 = scmp.ne.s32.totalorder %s90, %s93
      %p99 = scmp.eq.s32.totalorder %s12, 0
      %p100 = por %p98, %p99
      %p101 = scmp.ne.s32.totalorder %s90, %s93
      %p102 = scmp.eq.s32.totalorder %s17, 1
      %p103 = por %p101, %p102
      %p104 = scmp.ne.s32.totalorder %s93, %s94
      %p105 = scmp.eq.s32.totalorder %s17, 0
      %p106 = por %p104, %p105
      %p107 = scmp.ne.s32.totalorder %s93, %s94
      %p108 = scmp.eq.s32.totalorder %s18, 1
      %p109 = por %p107, %p108
      %p111 = scmp.ne.s32.totalorder %s94, %s110
      %p112 = scmp.eq.s32.totalorder %s18, 0
      %p113 = por %p111, %p112
      %p114 = scmp.le.s32.totalorder 1, %s12
      %p115 = scmp.lt.s32.totalorder %s12, 3
      %p116 = pnand %p114, %p115
      %p117 = pneg %p116
      // Predicated region
      $region9: #{time_distributed_linear.1} parent=5 // pred_check
        _
      $region10: #{time_distributed_linear.1} parent=5 // pred_check_branch
        %119 = sbr.rel (%p116) target = $region12
      $region11: #{time_distributed_linear.1} parent=5 // pred_region
        %s120 = ssub.s32 %s12, 1
        // Predicated region
        $region13: #{time_distributed_linear.1} parent=11 // pred_check
          %p121 = pneg %p59
        $region14: #{time_distributed_linear.1} parent=11 // pred_check_branch
          %123 = sbr.rel (%p121) target = $region16
        $region15: #{time_distributed_linear.1} parent=11 // pred_region
          _
        $region16: #{time_distributed_linear.1} parent=11 // pred_fallthru
          _
        // Predicated region
        $region17: #{time_distributed_linear.1} parent=11 // pred_check
          %p124 = pneg %p80
        $region18: #{time_distributed_linear.1} parent=11 // pred_check_branch
          %126 = sbr.rel (%p124) target = $region20
        $region19: #{time_distributed_linear.1} parent=11 // pred_region
          _
        $region20: #{time_distributed_linear.1} parent=11 // pred_fallthru
          _
      $region12: #{time_distributed_linear.1} parent=5 // pred_fallthru
        _
      %p127 = scmp.lt.s32.totalorder %s12, 2
      // Predicated region
      $region21: #{time_distributed_linear.1} parent=5 // pred_check
        %p128 = pneg %p127
      $region22: #{time_distributed_linear.1} parent=5 // pred_check_branch
        %130 = sbr.rel (%p128) target = $region24
      $region23: #{time_distributed_linear.1} parent=5 // pred_region
        // Predicated region
        $region25: #{time_distributed_linear.1} parent=23 // pred_check
          %p131 = pneg %p32
        $region26: #{time_distributed_linear.1} parent=23 // pred_check_branch
          %133 = sbr.rel (%p131) target = $region28
        $region27: #{time_distributed_linear.1} parent=23 // pred_region
          %p134 = scmp.lt.s32.totalorder %s12, 1
          %s135 = scalar_select %p134, %s12, 1
          %s136 = smul.addr %s135, 8
          %s137 = smul.addr %s136, 8
          %s138 = scalar_lea.vmem %s0, %s137
        $region28: #{time_distributed_linear.1} parent=23 // pred_fallthru
          _
      $region24: #{time_distributed_linear.1} parent=5 // pred_fallthru
        _
      %p139 = scmp.le.s32.totalorder 1, %s12
      %p140 = scmp.lt.s32.totalorder %s12, 3
      %p141 = pnand %p139, %p140
      %p142 = pneg %p141
      // Predicated region
      $region29: #{time_distributed_linear.1} parent=5 // pred_check
        _
      $region30: #{time_distributed_linear.1} parent=5 // pred_check_branch
        %144 = sbr.rel (%p141) target = $region32
      $region31: #{time_distributed_linear.1} parent=5 // pred_region
        %s145 = ssub.s32 %s12, 1
        %p146 = scmp.lt.s32.totalorder %s17, 1
        %s147 = scalar_select %p146, %s17, 1
        %s148 = smul.addr %s147, 8
        %s149 = smul.addr %s148, 8
        %s150 = scalar_lea.vmem %s0, %s149
        %p151 = pneg %p38
        %p152 = pneg %p35
        %p153 = pneg %p59
        %p154 = pneg %p56
        %p155 = pneg %p80
        %p156 = pneg %p77
        %p157 = pneg %p106
        %p158 = pneg %p103
        %s159 = sand.u32 %s93, 1
        %s160 = scalar_lea.sflag [#allocation3], %s159
        %s161 = sand.u32 %s93, 1
        %s162 = smul.addr %s161, 8
        %s163 = scalar_lea.vmem [#allocation2], %s162
        %p164 = scmp.lt.s32.totalorder %s17, 1
        %s165 = scalar_select %p164, %s17, 1
        %s166 = smul.addr %s165, 8
        %s167 = smul.addr %s166, 8
        %s168 = scalar_lea.vmem %s0, %s167
        %v170 = vld [vmem:[%s168] sm:$0xff]
        %v171 = vld [vmem:[%s168 + $0x8] sm:$0xff]
        %v172 = vld [vmem:[%s168 + $0x10] sm:$0xff]
        %v173 = vld [vmem:[%s168 + $0x18] sm:$0xff]
        %v174 = vld [vmem:[%s168 + $0x20] sm:$0xff]
        %v175 = vld [vmem:[%s168 + $0x28] sm:$0xff]
        %v176 = vld [vmem:[%s168 + $0x30] sm:$0xff]
        %v177 = vld [vmem:[%s168 + $0x38] sm:$0xff]
        %v178 = vpack.c.bf16 %v170, %v170
        %v179 = vpack.c.bf16 %v171, %v171
        %v180 = vpack.c.bf16 %v172, %v172
        %v181 = vpack.c.bf16 %v173, %v173
        %v182 = vpack.c.bf16 %v174, %v174
        %v183 = vpack.c.bf16 %v175, %v175
        %v184 = vpack.c.bf16 %v176, %v176
        %v185 = vpack.c.bf16 %v177, %v177
        %v186 = vld [vmem:[%s1] sm:$0xf]
        %v187 = vld [vmem:[%s1 + $0x4] sm:$0xf]
        %v188 = vld [vmem:[%s1 + $0x8] sm:$0xf]
        %v189 = vld [vmem:[%s1 + $0xc] sm:$0xf]
        %v190 = vld [vmem:[%s1 + $0x10] sm:$0xf]
        %v191 = vld [vmem:[%s1 + $0x14] sm:$0xf]
        %v192 = vld [vmem:[%s1 + $0x18] sm:$0xf]
        %v193 = vld [vmem:[%s1 + $0x1c] sm:$0xf]
        %v194 = vld [vmem:[%s1 + $0x20] sm:$0xf]
        %v195 = vld [vmem:[%s1 + $0x24] sm:$0xf]
        %v196 = vld [vmem:[%s1 + $0x28] sm:$0xf]
        %v197 = vld [vmem:[%s1 + $0x2c] sm:$0xf]
        %v198 = vld [vmem:[%s1 + $0x30] sm:$0xf]
        %v199 = vld [vmem:[%s1 + $0x34] sm:$0xf]
        %v200 = vld [vmem:[%s1 + $0x38] sm:$0xf]
        %v201 = vld [vmem:[%s1 + $0x3c] sm:$0xf]
        %v202 = vld [vmem:[%s1 + $0x40] sm:$0xf]
        %v203 = vld [vmem:[%s1 + $0x44] sm:$0xf]
        %v204 = vld [vmem:[%s1 + $0x48] sm:$0xf]
        %v205 = vld [vmem:[%s1 + $0x4c] sm:$0xf]
        %v206 = vld [vmem:[%s1 + $0x50] sm:$0xf]
        %v207 = vld [vmem:[%s1 + $0x54] sm:$0xf]
        %v208 = vld [vmem:[%s1 + $0x58] sm:$0xf]
        %v209 = vld [vmem:[%s1 + $0x5c] sm:$0xf]
        %v210 = vld [vmem:[%s1 + $0x60] sm:$0xf]
        %v211 = vld [vmem:[%s1 + $0x64] sm:$0xf]
        %v212 = vld [vmem:[%s1 + $0x68] sm:$0xf]
        %v213 = vld [vmem:[%s1 + $0x6c] sm:$0xf]
        %v214 = vld [vmem:[%s1 + $0x70] sm:$0xf]
        %v215 = vld [vmem:[%s1 + $0x74] sm:$0xf]
        %v216 = vld [vmem:[%s1 + $0x78] sm:$0xf]
        %v217 = vld [vmem:[%s1 + $0x7c] sm:$0xf]
        %v218 = vld [vmem:[%s1 + $0x80] sm:$0xf]
        %v219 = vld [vmem:[%s1 + $0x84] sm:$0xf]
        %v220 = vld [vmem:[%s1 + $0x88] sm:$0xf]
        %v221 = vld [vmem:[%s1 + $0x8c] sm:$0xf]
        %v222 = vld [vmem:[%s1 + $0x90] sm:$0xf]
        %v223 = vld [vmem:[%s1 + $0x94] sm:$0xf]
        %v224 = vld [vmem:[%s1 + $0x98] sm:$0xf]
        %v225 = vld [vmem:[%s1 + $0x9c] sm:$0xf]
        %v226 = vld [vmem:[%s1 + $0xa0] sm:$0xf]
        %v227 = vld [vmem:[%s1 + $0xa4] sm:$0xf]
        %v228 = vld [vmem:[%s1 + $0xa8] sm:$0xf]
        %v229 = vld [vmem:[%s1 + $0xac] sm:$0xf]
        %v230 = vld [vmem:[%s1 + $0xb0] sm:$0xf]
        %v231 = vld [vmem:[%s1 + $0xb4] sm:$0xf]
        %v232 = vld [vmem:[%s1 + $0xb8] sm:$0xf]
        %v233 = vld [vmem:[%s1 + $0xbc] sm:$0xf]
        %v234 = vld [vmem:[%s1 + $0xc0] sm:$0xf]
        %v235 = vld [vmem:[%s1 + $0xc4] sm:$0xf]
        %v236 = vld [vmem:[%s1 + $0xc8] sm:$0xf]
        %v237 = vld [vmem:[%s1 + $0xcc] sm:$0xf]
        %v238 = vld [vmem:[%s1 + $0xd0] sm:$0xf]
        %v239 = vld [vmem:[%s1 + $0xd4] sm:$0xf]
        %v240 = vld [vmem:[%s1 + $0xd8] sm:$0xf]
        %v241 = vld [vmem:[%s1 + $0xdc] sm:$0xf]
        %v242 = vld [vmem:[%s1 + $0xe0] sm:$0xf]
        %v243 = vld [vmem:[%s1 + $0xe4] sm:$0xf]
        %v244 = vld [vmem:[%s1 + $0xe8] sm:$0xf]
        %v245 = vld [vmem:[%s1 + $0xec] sm:$0xf]
        %v246 = vld [vmem:[%s1 + $0xf0] sm:$0xf]
        %v247 = vld [vmem:[%s1 + $0xf4] sm:$0xf]
        %v248 = vld [vmem:[%s1 + $0xf8] sm:$0xf]
        %v249 = vld [vmem:[%s1 + $0xfc] sm:$0xf]
        %v250 = vld [vmem:[%s1 + $0x100] sm:$0xf]
        %v251 = vld [vmem:[%s1 + $0x104] sm:$0xf]
        %v252 = vld [vmem:[%s1 + $0x108] sm:$0xf]
        %v253 = vld [vmem:[%s1 + $0x10c] sm:$0xf]
        %v254 = vld [vmem:[%s1 + $0x110] sm:$0xf]
        %v255 = vld [vmem:[%s1 + $0x114] sm:$0xf]
        %v256 = vld [vmem:[%s1 + $0x118] sm:$0xf]
        %v257 = vld [vmem:[%s1 + $0x11c] sm:$0xf]
        %v258 = vld [vmem:[%s1 + $0x120] sm:$0xf]
        %v259 = vld [vmem:[%s1 + $0x124] sm:$0xf]
        %v260 = vld [vmem:[%s1 + $0x128] sm:$0xf]
        %v261 = vld [vmem:[%s1 + $0x12c] sm:$0xf]
        %v262 = vld [vmem:[%s1 + $0x130] sm:$0xf]
        %v263 = vld [vmem:[%s1 + $0x134] sm:$0xf]
        %v264 = vld [vmem:[%s1 + $0x138] sm:$0xf]
        %v265 = vld [vmem:[%s1 + $0x13c] sm:$0xf]
        %v266 = vld [vmem:[%s1 + $0x140] sm:$0xf]
        %v267 = vld [vmem:[%s1 + $0x144] sm:$0xf]
        %v268 = vld [vmem:[%s1 + $0x148] sm:$0xf]
        %v269 = vld [vmem:[%s1 + $0x14c] sm:$0xf]
        %v270 = vld [vmem:[%s1 + $0x150] sm:$0xf]
        %v271 = vld [vmem:[%s1 + $0x154] sm:$0xf]
        %v272 = vld [vmem:[%s1 + $0x158] sm:$0xf]
        %v273 = vld [vmem:[%s1 + $0x15c] sm:$0xf]
        %v274 = vld [vmem:[%s1 + $0x160] sm:$0xf]
        %v275 = vld [vmem:[%s1 + $0x164] sm:$0xf]
        %v276 = vld [vmem:[%s1 + $0x168] sm:$0xf]
        %v277 = vld [vmem:[%s1 + $0x16c] sm:$0xf]
        %v278 = vld [vmem:[%s1 + $0x170] sm:$0xf]
        %v279 = vld [vmem:[%s1 + $0x174] sm:$0xf]
        %v280 = vld [vmem:[%s1 + $0x178] sm:$0xf]
        %v281 = vld [vmem:[%s1 + $0x17c] sm:$0xf]
        %v282 = vld [vmem:[%s1 + $0x180] sm:$0xf]
        %v283 = vld [vmem:[%s1 + $0x184] sm:$0xf]
        %v284 = vld [vmem:[%s1 + $0x188] sm:$0xf]
        %v285 = vld [vmem:[%s1 + $0x18c] sm:$0xf]
        %v286 = vld [vmem:[%s1 + $0x190] sm:$0xf]
        %v287 = vld [vmem:[%s1 + $0x194] sm:$0xf]
        %v288 = vld [vmem:[%s1 + $0x198] sm:$0xf]
        %v289 = vld [vmem:[%s1 + $0x19c] sm:$0xf]
        %v290 = vld [vmem:[%s1 + $0x1a0] sm:$0xf]
        %v291 = vld [vmem:[%s1 + $0x1a4] sm:$0xf]
        %v292 = vld [vmem:[%s1 + $0x1a8] sm:$0xf]
        %v293 = vld [vmem:[%s1 + $0x1ac] sm:$0xf]
        %v294 = vld [vmem:[%s1 + $0x1b0] sm:$0xf]
        %v295 = vld [vmem:[%s1 + $0x1b4] sm:$0xf]
        %v296 = vld [vmem:[%s1 + $0x1b8] sm:$0xf]
        %v297 = vld [vmem:[%s1 + $0x1bc] sm:$0xf]
        %v298 = vld [vmem:[%s1 + $0x1c0] sm:$0xf]
        %v299 = vld [vmem:[%s1 + $0x1c4] sm:$0xf]
        %v300 = vld [vmem:[%s1 + $0x1c8] sm:$0xf]
        %v301 = vld [vmem:[%s1 + $0x1cc] sm:$0xf]
        %v302 = vld [vmem:[%s1 + $0x1d0] sm:$0xf]
        %v303 = vld [vmem:[%s1 + $0x1d4] sm:$0xf]
        %v304 = vld [vmem:[%s1 + $0x1d8] sm:$0xf]
        %v305 = vld [vmem:[%s1 + $0x1dc] sm:$0xf]
        %v306 = vld [vmem:[%s1 + $0x1e0] sm:$0xf]
        %v307 = vld [vmem:[%s1 + $0x1e4] sm:$0xf]
        %v308 = vld [vmem:[%s1 + $0x1e8] sm:$0xf]
        %v309 = vld [vmem:[%s1 + $0x1ec] sm:$0xf]
        %v310 = vld [vmem:[%s1 + $0x1f0] sm:$0xf]
        %v311 = vld [vmem:[%s1 + $0x1f4] sm:$0xf]
        %v312 = vld [vmem:[%s1 + $0x1f8] sm:$0xf]
        %v313 = vld [vmem:[%s1 + $0x1fc] sm:$0xf]
        %v314 = vld [vmem:[%s2] sm:$0x1]
        %v316 = vlaneseq
        %v317 = vshrl.u32 %v316, 7
        %v318 = vsub.s32 0, %v317
        %v319 = vrot.slane %v314, %v318
        %v449 = vunpack.c.l.b16 %v186
        %v450 = vunpack.c.l.b16 %v187
        %v451 = vunpack.c.l.b16 %v188
        %v452 = vunpack.c.l.b16 %v189
        %v453 = vunpack.c.l.b16 %v190
        %v454 = vunpack.c.l.b16 %v191
        %v455 = vunpack.c.l.b16 %v192
        %v456 = vunpack.c.l.b16 %v193
        %v457 = vunpack.c.l.b16 %v194
        %v458 = vunpack.c.l.b16 %v195
        %v459 = vunpack.c.l.b16 %v196
        %v460 = vunpack.c.l.b16 %v197
        %v461 = vunpack.c.l.b16 %v198
        %v462 = vunpack.c.l.b16 %v199
        %v463 = vunpack.c.l.b16 %v200
        %v464 = vunpack.c.l.b16 %v201
        %v465 = vunpack.c.l.b16 %v202
        %v466 = vunpack.c.l.b16 %v203
        %v467 = vunpack.c.l.b16 %v204
        %v468 = vunpack.c.l.b16 %v205
        %v469 = vunpack.c.l.b16 %v206
        %v470 = vunpack.c.l.b16 %v207
        %v471 = vunpack.c.l.b16 %v208
        %v472 = vunpack.c.l.b16 %v209
        %v473 = vunpack.c.l.b16 %v210
        %v474 = vunpack.c.l.b16 %v211
        %v475 = vunpack.c.l.b16 %v212
        %v476 = vunpack.c.l.b16 %v213
        %v477 = vunpack.c.l.b16 %v214
        %v478 = vunpack.c.l.b16 %v215
        %v479 = vunpack.c.l.b16 %v216
        %v480 = vunpack.c.l.b16 %v217
        %v481 = vunpack.c.l.b16 %v218
        %v482 = vunpack.c.l.b16 %v219
        %v483 = vunpack.c.l.b16 %v220
        %v484 = vunpack.c.l.b16 %v221
        %v485 = vunpack.c.l.b16 %v222
        %v486 = vunpack.c.l.b16 %v223
        %v487 = vunpack.c.l.b16 %v224
        %v488 = vunpack.c.l.b16 %v225
        %v489 = vunpack.c.l.b16 %v226
        %v490 = vunpack.c.l.b16 %v227
        %v491 = vunpack.c.l.b16 %v228
        %v492 = vunpack.c.l.b16 %v229
        %v493 = vunpack.c.l.b16 %v230
        %v494 = vunpack.c.l.b16 %v231
        %v495 = vunpack.c.l.b16 %v232
        %v496 = vunpack.c.l.b16 %v233
        %v497 = vunpack.c.l.b16 %v234
        %v498 = vunpack.c.l.b16 %v235
        %v499 = vunpack.c.l.b16 %v236
        %v500 = vunpack.c.l.b16 %v237
        %v501 = vunpack.c.l.b16 %v238
        %v502 = vunpack.c.l.b16 %v239
        %v503 = vunpack.c.l.b16 %v240
        %v504 = vunpack.c.l.b16 %v241
        %v505 = vunpack.c.l.b16 %v242
        %v506 = vunpack.c.l.b16 %v243
        %v507 = vunpack.c.l.b16 %v244
        %v508 = vunpack.c.l.b16 %v245
        %v509 = vunpack.c.l.b16 %v246
        %v510 = vunpack.c.l.b16 %v247
        %v511 = vunpack.c.l.b16 %v248
        %v512 = vunpack.c.l.b16 %v249
        %v513 = vunpack.c.l.b16 %v250
        %v514 = vunpack.c.l.b16 %v251
        %v515 = vunpack.c.l.b16 %v252
        %v516 = vunpack.c.l.b16 %v253
        %v517 = vunpack.c.l.b16 %v254
        %v518 = vunpack.c.l.b16 %v255
        %v519 = vunpack.c.l.b16 %v256
        %v520 = vunpack.c.l.b16 %v257
        %v521 = vunpack.c.l.b16 %v258
        %v522 = vunpack.c.l.b16 %v259
        %v523 = vunpack.c.l.b16 %v260
        %v524 = vunpack.c.l.b16 %v261
        %v525 = vunpack.c.l.b16 %v262
        %v526 = vunpack.c.l.b16 %v263
        %v527 = vunpack.c.l.b16 %v264
        %v528 = vunpack.c.l.b16 %v265
        %v529 = vunpack.c.l.b16 %v266
        %v530 = vunpack.c.l.b16 %v267
        %v531 = vunpack.c.l.b16 %v268
        %v532 = vunpack.c.l.b16 %v269
        %v533 = vunpack.c.l.b16 %v270
        %v534 = vunpack.c.l.b16 %v271
        %v535 = vunpack.c.l.b16 %v272
        %v536 = vunpack.c.l.b16 %v273
        %v537 = vunpack.c.l.b16 %v274
        %v538 = vunpack.c.l.b16 %v275
        %v539 = vunpack.c.l.b16 %v276
        %v540 = vunpack.c.l.b16 %v277
        %v541 = vunpack.c.l.b16 %v278
        %v542 = vunpack.c.l.b16 %v279
        %v543 = vunpack.c.l.b16 %v280
        %v544 = vunpack.c.l.b16 %v281
        %v545 = vunpack.c.l.b16 %v282
        %v546 = vunpack.c.l.b16 %v283
        %v547 = vunpack.c.l.b16 %v284
        %v548 = vunpack.c.l.b16 %v285
        %v549 = vunpack.c.l.b16 %v286
        %v550 = vunpack.c.l.b16 %v287
        %v551 = vunpack.c.l.b16 %v288
        %v552 = vunpack.c.l.b16 %v289
        %v553 = vunpack.c.l.b16 %v290
        %v554 = vunpack.c.l.b16 %v291
        %v555 = vunpack.c.l.b16 %v292
        %v556 = vunpack.c.l.b16 %v293
        %v557 = vunpack.c.l.b16 %v294
        %v558 = vunpack.c.l.b16 %v295
        %v559 = vunpack.c.l.b16 %v296
        %v560 = vunpack.c.l.b16 %v297
        %v561 = vunpack.c.l.b16 %v298
        %v562 = vunpack.c.l.b16 %v299
        %v563 = vunpack.c.l.b16 %v300
        %v564 = vunpack.c.l.b16 %v301
        %v565 = vunpack.c.l.b16 %v302
        %v566 = vunpack.c.l.b16 %v303
        %v567 = vunpack.c.l.b16 %v304
        %v568 = vunpack.c.l.b16 %v305
        %v569 = vunpack.c.l.b16 %v306
        %v570 = vunpack.c.l.b16 %v307
        %v571 = vunpack.c.l.b16 %v308
        %v572 = vunpack.c.l.b16 %v309
        %v573 = vunpack.c.l.b16 %v310
        %v574 = vunpack.c.l.b16 %v311
        %v575 = vunpack.c.l.b16 %v312
        %v576 = vunpack.c.l.b16 %v313
        %v577 = vpack.c.b16 %v450, %v449
        %v578 = vpack.c.b16 %v452, %v451
        %v579 = vpack.c.b16 %v454, %v453
        %v580 = vpack.c.b16 %v456, %v455
        %v581 = vpack.c.b16 %v458, %v457
        %v582 = vpack.c.b16 %v460, %v459
        %v583 = vpack.c.b16 %v462, %v461
        %v584 = vpack.c.b16 %v464, %v463
        %v585 = vpack.c.b16 %v466, %v465
        %v586 = vpack.c.b16 %v468, %v467
        %v587 = vpack.c.b16 %v470, %v469
        %v588 = vpack.c.b16 %v472, %v471
        %v589 = vpack.c.b16 %v474, %v473
        %v590 = vpack.c.b16 %v476, %v475
        %v591 = vpack.c.b16 %v478, %v477
        %v592 = vpack.c.b16 %v480, %v479
        %v593 = vpack.c.b16 %v482, %v481
        %v594 = vpack.c.b16 %v484, %v483
        %v595 = vpack.c.b16 %v486, %v485
        %v596 = vpack.c.b16 %v488, %v487
        %v597 = vpack.c.b16 %v490, %v489
        %v598 = vpack.c.b16 %v492, %v491
        %v599 = vpack.c.b16 %v494, %v493
        %v600 = vpack.c.b16 %v496, %v495
        %v601 = vpack.c.b16 %v498, %v497
        %v602 = vpack.c.b16 %v500, %v499
        %v603 = vpack.c.b16 %v502, %v501
        %v604 = vpack.c.b16 %v504, %v503
        %v605 = vpack.c.b16 %v506, %v505
        %v606 = vpack.c.b16 %v508, %v507
        %v607 = vpack.c.b16 %v510, %v509
        %v608 = vpack.c.b16 %v512, %v511
        %v609 = vpack.c.b16 %v514, %v513
        %v610 = vpack.c.b16 %v516, %v515
        %v611 = vpack.c.b16 %v518, %v517
        %v612 = vpack.c.b16 %v520, %v519
        %v613 = vpack.c.b16 %v522, %v521
        %v614 = vpack.c.b16 %v524, %v523
        %v615 = vpack.c.b16 %v526, %v525
        %v616 = vpack.c.b16 %v528, %v527
        %v617 = vpack.c.b16 %v530, %v529
        %v618 = vpack.c.b16 %v532, %v531
        %v619 = vpack.c.b16 %v534, %v533
        %v620 = vpack.c.b16 %v536, %v535
        %v621 = vpack.c.b16 %v538, %v537
        %v622 = vpack.c.b16 %v540, %v539
        %v623 = vpack.c.b16 %v542, %v541
        %v624 = vpack.c.b16 %v544, %v543
        %v625 = vpack.c.b16 %v546, %v545
        %v626 = vpack.c.b16 %v548, %v547
        %v627 = vpack.c.b16 %v550, %v549
        %v628 = vpack.c.b16 %v552, %v551
        %v629 = vpack.c.b16 %v554, %v553
        %v630 = vpack.c.b16 %v556, %v555
        %v631 = vpack.c.b16 %v558, %v557
        %v632 = vpack.c.b16 %v560, %v559
        %v633 = vpack.c.b16 %v562, %v561
        %v634 = vpack.c.b16 %v564, %v563
        %v635 = vpack.c.b16 %v566, %v565
        %v636 = vpack.c.b16 %v568, %v567
        %v637 = vpack.c.b16 %v570, %v569
        %v638 = vpack.c.b16 %v572, %v571
        %v639 = vpack.c.b16 %v574, %v573
        %v640 = vpack.c.b16 %v576, %v575
        %705 = vmatprep.subr.bf16.mxu0 0
        %706 = vmatpush1.bf16.msra.mxu0 %v577
        %707 = vmatprep.subr.bf16.mxu0 0
        %708 = vmatpush1.bf16.msra.mxu0 %v578
        %709 = vmatprep.subr.bf16.mxu0 0
        %710 = vmatpush1.bf16.msra.mxu0 %v579
        %711 = vmatprep.subr.bf16.mxu0 0
        %712 = vmatpush1.bf16.msra.mxu0 %v580
        %713 = vmatprep.subr.bf16.mxu0 0
        %714 = vmatpush1.bf16.msra.mxu0 %v581
        %715 = vmatprep.subr.bf16.mxu0 0
        %716 = vmatpush1.bf16.msra.mxu0 %v582
        %717 = vmatprep.subr.bf16.mxu0 0
        %718 = vmatpush1.bf16.msra.mxu0 %v583
        %719 = vmatprep.subr.bf16.mxu0 0
        %720 = vmatpush1.bf16.msra.mxu0 %v584
        %721 = vmatprep.subr.bf16.mxu0 0
        %722 = vmatpush1.bf16.msra.mxu0 %v585
        %723 = vmatprep.subr.bf16.mxu0 0
        %724 = vmatpush1.bf16.msra.mxu0 %v586
        %725 = vmatprep.subr.bf16.mxu0 0
        %726 = vmatpush1.bf16.msra.mxu0 %v587
        %727 = vmatprep.subr.bf16.mxu0 0
        %728 = vmatpush1.bf16.msra.mxu0 %v588
        %729 = vmatprep.subr.bf16.mxu0 0
        %730 = vmatpush1.bf16.msra.mxu0 %v589
        %731 = vmatprep.subr.bf16.mxu0 0
        %732 = vmatpush1.bf16.msra.mxu0 %v590
        %733 = vmatprep.subr.bf16.mxu0 0
        %734 = vmatpush1.bf16.msra.mxu0 %v591
        %735 = vmatprep.subr.bf16.mxu0 0
        %736 = vmatpush1.bf16.msra.mxu0 %v592
        %737 = vmatprep.mubr.bf16.mxu0 %v179
        %738 = vmatmul.mubr.bf16.gmra.mrb[0].mxu0 %v178
        %v739 = vpop.f32.mrb[0].mxu0
        %v740 = vadd.f32 %v319, %v739
        %v741 = vpop.f32.mrb[0].mxu0
        %v742 = vpop.f32.mrb[0].mxu0
        %v743 = vpop.f32.mrb[0].mxu0
        %744 = vdwg.mxu0
        %745 = vmatprep.subr.bf16.mxu0 0
        %746 = vmatpush1.bf16.msra.mxu0 %v593
        %747 = vmatprep.subr.bf16.mxu0 0
        %748 = vmatpush1.bf16.msra.mxu0 %v594
        %749 = vmatprep.subr.bf16.mxu0 0
        %750 = vmatpush1.bf16.msra.mxu0 %v595
        %751 = vmatprep.subr.bf16.mxu0 0
        %752 = vmatpush1.bf16.msra.mxu0 %v596
        %753 = vmatprep.subr.bf16.mxu0 0
        %754 = vmatpush1.bf16.msra.mxu0 %v597
        %755 = vmatprep.subr.bf16.mxu0 0
        %756 = vmatpush1.bf16.msra.mxu0 %v598
        %757 = vmatprep.subr.bf16.mxu0 0
        %758 = vmatpush1.bf16.msra.mxu0 %v599
        %759 = vmatprep.subr.bf16.mxu0 0
        %760 = vmatpush1.bf16.msra.mxu0 %v600
        %761 = vmatprep.subr.bf16.mxu0 0
        %762 = vmatpush1.bf16.msra.mxu0 %v601
        %763 = vmatprep.subr.bf16.mxu0 0
        %764 = vmatpush1.bf16.msra.mxu0 %v602
        %765 = vmatprep.subr.bf16.mxu0 0
        %766 = vmatpush1.bf16.msra.mxu0 %v603
        %767 = vmatprep.subr.bf16.mxu0 0
        %768 = vmatpush1.bf16.msra.mxu0 %v604
        %769 = vmatprep.subr.bf16.mxu0 0
        %770 = vmatpush1.bf16.msra.mxu0 %v605
        %771 = vmatprep.subr.bf16.mxu0 0
        %772 = vmatpush1.bf16.msra.mxu0 %v606
        %773 = vmatprep.subr.bf16.mxu0 0
        %774 = vmatpush1.bf16.msra.mxu0 %v607
        %775 = vmatprep.subr.bf16.mxu0 0
        %776 = vmatpush1.bf16.msra.mxu0 %v608
        %777 = vmatprep.mubr.bf16.mxu0 %v181
        %778 = vmatmul.mubr.bf16.gmra.mrb[0].mxu0 %v180
        %v779 = vpop.f32.mrb[0].mxu0
        %v780 = vadd.f32 %v740, %v779
        %v781 = vpop.f32.mrb[0].mxu0
        %v782 = vpop.f32.mrb[0].mxu0
        %v783 = vpop.f32.mrb[0].mxu0
        %784 = vdwg.mxu0
        %785 = vmatprep.subr.bf16.mxu0 0
        %786 = vmatpush1.bf16.msra.mxu0 %v609
        %787 = vmatprep.subr.bf16.mxu0 0
        %788 = vmatpush1.bf16.msra.mxu0 %v610
        %789 = vmatprep.subr.bf16.mxu0 0
        %790 = vmatpush1.bf16.msra.mxu0 %v611
        %791 = vmatprep.subr.bf16.mxu0 0
        %792 = vmatpush1.bf16.msra.mxu0 %v612
        %793 = vmatprep.subr.bf16.mxu0 0
        %794 = vmatpush1.bf16.msra.mxu0 %v613
        %795 = vmatprep.subr.bf16.mxu0 0
        %796 = vmatpush1.bf16.msra.mxu0 %v614
        %797 = vmatprep.subr.bf16.mxu0 0
        %798 = vmatpush1.bf16.msra.mxu0 %v615
        %799 = vmatprep.subr.bf16.mxu0 0
        %800 = vmatpush1.bf16.msra.mxu0 %v616
        %801 = vmatprep.subr.bf16.mxu0 0
        %802 = vmatpush1.bf16.msra.mxu0 %v617
        %803 = vmatprep.subr.bf16.mxu0 0
        %804 = vmatpush1.bf16.msra.mxu0 %v618
        %805 = vmatprep.subr.bf16.mxu0 0
        %806 = vmatpush1.bf16.msra.mxu0 %v619
        %807 = vmatprep.subr.bf16.mxu0 0
        %808 = vmatpush1.bf16.msra.mxu0 %v620
        %809 = vmatprep.subr.bf16.mxu0 0
        %810 = vmatpush1.bf16.msra.mxu0 %v621
        %811 = vmatprep.subr.bf16.mxu0 0
        %812 = vmatpush1.bf16.msra.mxu0 %v622
        %813 = vmatprep.subr.bf16.mxu0 0
        %814 = vmatpush1.bf16.msra.mxu0 %v623
        %815 = vmatprep.subr.bf16.mxu0 0
        %816 = vmatpush1.bf16.msra.mxu0 %v624
        %817 = vmatprep.mubr.bf16.mxu0 %v183
        %818 = vmatmul.mubr.bf16.gmra.mrb[0].mxu0 %v182
        %v819 = vpop.f32.mrb[0].mxu0
        %v820 = vadd.f32 %v780, %v819
        %v821 = vpop.f32.mrb[0].mxu0
        %v822 = vpop.f32.mrb[0].mxu0
        %v823 = vpop.f32.mrb[0].mxu0
        %824 = vdwg.mxu0
        %825 = vmatprep.subr.bf16.mxu0 0
        %826 = vmatpush1.bf16.msra.mxu0 %v625
        %827 = vmatprep.subr.bf16.mxu0 0
        %828 = vmatpush1.bf16.msra.mxu0 %v626
        %829 = vmatprep.subr.bf16.mxu0 0
        %830 = vmatpush1.bf16.msra.mxu0 %v627
        %831 = vmatprep.subr.bf16.mxu0 0
        %832 = vmatpush1.bf16.msra.mxu0 %v628
        %833 = vmatprep.subr.bf16.mxu0 0
        %834 = vmatpush1.bf16.msra.mxu0 %v629
        %835 = vmatprep.subr.bf16.mxu0 0
        %836 = vmatpush1.bf16.msra.mxu0 %v630
        %837 = vmatprep.subr.bf16.mxu0 0
        %838 = vmatpush1.bf16.msra.mxu0 %v631
        %839 = vmatprep.subr.bf16.mxu0 0
        %840 = vmatpush1.bf16.msra.mxu0 %v632
        %841 = vmatprep.subr.bf16.mxu0 0
        %842 = vmatpush1.bf16.msra.mxu0 %v633
        %843 = vmatprep.subr.bf16.mxu0 0
        %844 = vmatpush1.bf16.msra.mxu0 %v634
        %845 = vmatprep.subr.bf16.mxu0 0
        %846 = vmatpush1.bf16.msra.mxu0 %v635
        %847 = vmatprep.subr.bf16.mxu0 0
        %848 = vmatpush1.bf16.msra.mxu0 %v636
        %849 = vmatprep.subr.bf16.mxu0 0
        %850 = vmatpush1.bf16.msra.mxu0 %v637
        %851 = vmatprep.subr.bf16.mxu0 0
        %852 = vmatpush1.bf16.msra.mxu0 %v638
        %853 = vmatprep.subr.bf16.mxu0 0
        %854 = vmatpush1.bf16.msra.mxu0 %v639
        %855 = vmatprep.subr.bf16.mxu0 0
        %856 = vmatpush1.bf16.msra.mxu0 %v640
        %857 = vmatprep.mubr.bf16.mxu0 %v185
        %858 = vmatmul.mubr.bf16.gmra.mrb[0].mxu0 %v184
        %v859 = vpop.f32.mrb[0].mxu0
        %v860 = vadd.f32 %v820, %v859
        %v861 = vpop.f32.mrb[0].mxu0
        %v862 = vpop.f32.mrb[0].mxu0
        %v863 = vpop.f32.mrb[0].mxu0
        %864 = vdwg.mxu0
        %vm865 = vcmask 261120
        %866 = vst.msk [vmem:[%s163] sm:$0xff] %vm865, %v860
        %s867 = sand.u32 %s93, 1
        %s868 = scalar_lea.sflag [#allocation3], %s867
        %s869 = sand.u32 %s93, 1
        %s870 = smul.addr %s869, 8
        %s871 = scalar_lea.vmem [#allocation2], %s870
        // Predicated region
        $region33: #{time_distributed_linear.1} parent=31 // pred_check
          %p872 = pneg %p103
        $region34: #{time_distributed_linear.1} parent=31 // pred_check_branch
          %874 = sbr.rel (%p872) target = $region36
        $region35: #{time_distributed_linear.1} parent=31 // pred_region
          %s876 = ssub.s32 128, 128
          %877 = vsyncadd %s868, %s876
          %s878 = smul.addr %s17, 128
          %s879 = scalar_lea.hbm %s3, %s878
          %s881 = sshll.u32 %s871, 4
          %s882 = int_to_ptr.vmem [resolvable:$true] %s881
          %884 = dma.vmem_to_hbm [thread:$0]  %s882, 128, %s879, %s868
        $region36: #{time_distributed_linear.1} parent=31 // pred_fallthru
          _
      $region32: #{time_distributed_linear.1} parent=5 // pred_fallthru
        _
      %p885 = scmp.le.s32.totalorder 2, %s12
      // Predicated region
      $region37: #{time_distributed_linear.1} parent=5 // pred_check
        %p886 = pneg %p885
      $region38: #{time_distributed_linear.1} parent=5 // pred_check_branch
        %888 = sbr.rel (%p886) target = $region40
      $region39: #{time_distributed_linear.1} parent=5 // pred_region
        %s889 = ssub.s32 %s12, 2
        // Predicated region
        $region41: #{time_distributed_linear.1} parent=39 // pred_check
          %p890 = pneg %p109
        $region42: #{time_distributed_linear.1} parent=39 // pred_check_branch
          %892 = sbr.rel (%p890) target = $region44
        $region43: #{time_distributed_linear.1} parent=39 // pred_region
          %s893 = sand.u32 %s94, 1
          %s894 = scalar_lea.sflag [#allocation3], %s893
          %s895 = sand.u32 %s94, 1
          %s896 = smul.addr %s895, 8
          %s897 = scalar_lea.vmem [#allocation2], %s896
          %898 = dma.done %s894, 128
        $region44: #{time_distributed_linear.1} parent=39 // pred_fallthru
          _
      $region40: #{time_distributed_linear.1} parent=5 // pred_fallthru
        _
    $region6: #{time_distributed_linear.1} parent=1 // loop_footer
      %s16 = sadd.s32 1, %s12
    $region7: #{time_distributed_linear.1} parent=1 // loop_footer_branch
      %11 = sbr.rel target = $region3
    $region8: #{time_distributed_linear.1} parent=1 // loop_exit
      _
    %899 = vsyncpa [#allocation3], 1
    %s900 = scalar_lea.sflag [#allocation3], 1
    %901 = vsyncpa %s900, 1

</llo_original>
